<compile_context>
chip_gen: v5e
topology: v5e:2x2
jax: 0.10.0
libtpu: 0.0.40
codegen_flags: <defaults>
</compile_context>

<pallas_src>
import functools

import jax
import jax.numpy as jnp
from jax import lax
from jax.experimental import pallas as pl
from jax.experimental.pallas import tpu as pltpu


def _conv_task_kernel(x_ref, w_ref, shift_ref, mask_ref, o_ref, im2col_ref,
                      *, W, HW, NB, CIN_PAD):
    # x_ref:      (NB, CIN_PAD, HW)        activations (channels zero-padded)
    # w_ref:      (Cout, 9*CIN_PAD)        folded 3x3 + 1x1-adapter + BN scale
    # shift_ref:  (Cout, 1)  f32           folded BN shift (eval mode)
    # mask_ref:   (9, NB*HW)               per-tap boundary masks (0/1)
    # o_ref:      (NB, Cout, HW) f32       lane-dense NCHW output
    # im2col_ref: (9*CIN_PAD, NB*HW)       VMEM scratch, fully rewritten/step
    L = NB * HW

    # Channel-major view of the whole batch block: (CIN_PAD, NB*HW).
    # Lane offsets are multiples of HW (multiple of 128) -> aligned copies.
    if NB == 1:
        xblk = x_ref[0]
    else:
        xblk = jnp.concatenate([x_ref[n] for n in range(NB)], axis=1)

    masks = mask_ref[...]                                    # (9, L)

    taps = [(kh - 1, kw - 1) for kh in range(3) for kw in range(3)]
    for t, (dh, dw) in enumerate(taps):
        s = dh * W + dw                                      # flattened shift
        if s == 0:
            patch = xblk                                     # center: all valid
        else:
            # One XLU roll per tap over the whole block; wrap / cross-image
            # reads land only on positions the boundary mask zeroes.
            rolled = pltpu.roll(xblk, (-s) % L, axis=1)
            patch = rolled * masks[t:t + 1, :]
        # Static, sublane-aligned slice-store (CIN_PAD is the packing multiple).
        im2col_ref[pl.ds(t * CIN_PAD, CIN_PAD), :] = patch

    # Single MXU contraction per grid step, f32 accumulation.
    acc = jnp.dot(w_ref[...], im2col_ref[...],
                  preferred_element_type=jnp.float32)        # (Cout, NB*HW)
    acc = acc + shift_ref[...]                               # BN shift

    for n in range(NB):                                      # lane-aligned slices
        o_ref[n] = acc[:, n * HW:(n + 1) * HW].astype(o_ref.dtype)


def conv_task_forward(x_nchw, w3_oihw, w1_oihw, gamma, beta,
                      running_mean, running_var, eps=1e-5,
                      batch_block=8, compute_dtype=jnp.bfloat16):
    """parallel_adapters conv_task forward. NCHW in -> NCHW out (f32)."""
    N, Cin, H, W = x_nchw.shape
    Cout = w3_oihw.shape[0]
    HW = H * W

    # --- exact algebraic folding in f32 (tiny weight tensors) ---------------
    # 1x1 parallel adapter == center tap of the 3x3 conv.
    w = w3_oihw.astype(jnp.float32).at[:, :, 1, 1].add(
        w1_oihw[:, :, 0, 0].astype(jnp.float32))
    # Eval-mode BN: fold scale into weights, keep only a per-channel shift.
    scale = gamma.astype(jnp.float32) / jnp.sqrt(
        running_var.astype(jnp.float32) + eps)
    shift = beta.astype(jnp.float32) - running_mean.astype(jnp.float32) * scale
    w = w * scale[:, None, None, None]

    # Sublane packing multiple for the compute dtype (f32: 8, bf16: 16).
    pack = 8 if compute_dtype == jnp.float32 else 16
    cin_pad = -(-Cin // pack) * pack

    # (Cout, Cin, 3, 3) -> (Cout, 3, 3, Cin_pad) -> (Cout, 9*Cin_pad);
    # K is tap-major, matching the kernel's patch stacking order.
    wk = jnp.transpose(w, (0, 2, 3, 1))
    wk = jnp.pad(wk, ((0, 0), (0, 0), (0, 0), (0, cin_pad - Cin)))
    wmat = wk.reshape(Cout, 9 * cin_pad).astype(compute_dtype)
    shift2 = shift.reshape(Cout, 1)

    # --- batch blocking ------------------------------------------------------
    nb = max(1, min(batch_block, N))
    # Keep >= 2 grid steps when possible so both v7x TensorCores get work
    # (free on the single-TC v5e/v6e).
    if N >= 2 and -(-N // nb) < 2:
        nb = -(-N // 2)
    n_pad = (-N) % nb
    n_total = N + n_pad

    # NCHW kept; spatial flatten is a free contiguous reshape. Cast to the
    # (bf16) compute dtype at the pallas_call boundary; pad channels/batch.
    x = x_nchw.astype(compute_dtype).reshape(N, Cin, HW)
    x = jnp.pad(x, ((0, n_pad), (0, cin_pad - Cin), (0, 0)))

    # --- per-tap boundary masks, built once (constant) ----------------------
    hh = jnp.arange(HW, dtype=jnp.int32) // W
    ww = jnp.arange(HW, dtype=jnp.int32) % W
    rows = []
    for dh in (-1, 0, 1):
        for dw in (-1, 0, 1):
            rows.append((hh + dh >= 0) & (hh + dh < H)
                        & (ww + dw >= 0) & (ww + dw < W))
    mask = jnp.stack(rows, axis=0).astype(compute_dtype)      # (9, HW)
    mask = jnp.tile(mask, (1, nb))                            # (9, nb*HW)

    kernel = functools.partial(_conv_task_kernel,
                               W=W, HW=HW, NB=nb, CIN_PAD=cin_pad)
    out = pl.pallas_call(
        kernel,
        out_shape=jax.ShapeDtypeStruct((n_total, Cout, HW), jnp.float32),
        grid_spec=pltpu.PrefetchScalarGridSpec(
            num_scalar_prefetch=0,
            grid=(n_total // nb,),
            in_specs=[
                pl.BlockSpec((nb, cin_pad, HW), lambda b: (b, 0, 0)),
                pl.BlockSpec((Cout, 9 * cin_pad), lambda b: (0, 0)),
                pl.BlockSpec((Cout, 1), lambda b: (0, 0)),
                pl.BlockSpec((9, nb * HW), lambda b: (0, 0)),
            ],
            out_specs=pl.BlockSpec((nb, Cout, HW), lambda b: (b, 0, 0)),
            scratch_shapes=[pltpu.VMEM((9 * cin_pad, nb * HW), compute_dtype)],
        ),
        compiler_params=pltpu.CompilerParams(
            dimension_semantics=("parallel",)),
    )(x, wmat, shift2, mask)

    return out[:N].reshape(N, Cout, H, W)


def _reference(x_nchw, w3_oihw, w1_oihw, gamma, beta, mean, var, eps=1e-5):
    y = lax.conv_general_dilated(
        x_nchw, w3_oihw, window_strides=(1, 1), padding=((1, 1), (1, 1)),
        dimension_numbers=('NCHW', 'OIHW', 'NCHW'))
    y = y + lax.conv_general_dilated(
        x_nchw, w1_oihw, window_strides=(1, 1), padding='VALID',
        dimension_numbers=('NCHW', 'OIHW', 'NCHW'))
    inv = 1.0 / jnp.sqrt(var + eps)
    return ((y - mean[None, :, None, None]) * inv[None, :, None, None]
            * gamma[None, :, None, None] + beta[None, :, None, None])


if __name__ == "__main__":
    # Small shapes consistent with the module: in_planes=4, planes=8, stride=1
    N, Cin, Cout, H, W = 2, 4, 8, 16, 16

    key = jax.random.PRNGKey(0)
    k_x, k_w3, k_w1, k_g, k_b, k_m, k_v = jax.random.split(key, 7)

    x = jax.random.normal(k_x, (N, Cin, H, W), jnp.float32)
    # PyTorch-style OIHW weight shapes.
    w3_oihw = jax.random.normal(k_w3, (Cout, Cin, 3, 3), jnp.float32) * 0.1
    w1_oihw = jax.random.normal(k_w1, (Cout, Cin, 1, 1), jnp.float32) * 0.1
    gamma = jax.random.normal(k_g, (Cout,), jnp.float32) * 0.1 + 1.0
    beta = jax.random.normal(k_b, (Cout,), jnp.float32) * 0.1
    running_mean = jax.random.normal(k_m, (Cout,), jnp.float32) * 0.1
    running_var = jax.random.uniform(k_v, (Cout,), jnp.float32,
                                     minval=0.5, maxval=1.5)

    ref = _reference(x, w3_oihw, w1_oihw, gamma, beta,
                     running_mean, running_var)

    # f32 compute path: exact-ish (tight tolerance), exercises the border
    # masking / roll wraparound logic over the full (boundary-heavy) image.
    out_f32 = conv_task_forward(x, w3_oihw, w1_oihw, gamma, beta,
                                running_mean, running_var,
                                compute_dtype=jnp.float32)
    out_f32 = jax.block_until_ready(out_f32)
    assert out_f32.shape == (N, Cout, H, W)
    assert jnp.allclose(out_f32, ref, atol=1e-4, rtol=1e-4), "f32 mismatch"

    # bf16 operand path (default, the fast one) with looser tolerance.
    out_bf16 = conv_task_forward(x, w3_oihw, w1_oihw, gamma, beta,
                                 running_mean, running_var,
                                 compute_dtype=jnp.bfloat16)
    out_bf16 = jax.block_until_ready(out_bf16)
    assert out_bf16.shape == (N, Cout, H, W)
    assert jnp.allclose(out_bf16, ref, atol=5e-2, rtol=5e-2), "bf16 mismatch"

    print("KERNEL_OK")
</pallas_src>

<mosaic_0001>
module attributes {stable_mosaic.version = 11 : i64} {
  func.func @_conv_task_kernel(%arg0: i32, %arg1: memref<1x8x256xf32, #tpu.memory_space<vmem>>, %arg2: memref<8x72xf32, #tpu.memory_space<vmem>>, %arg3: memref<8x1xf32, #tpu.memory_space<vmem>>, %arg4: memref<9x256xf32, #tpu.memory_space<vmem>>, %arg5: memref<1x8x256xf32, #tpu.memory_space<vmem>>, %arg6: memref<72x256xf32, #tpu.memory_space<vmem>>) attributes {dimension_semantics = [#tpu.dimension_semantics<parallel>], iteration_bounds = array<i64: 2>, scalar_prefetch = 0 : i64, scratch_operands = 1 : i64, tpu.core_type = #tpu.core_type<tc>, window_params = [{transform_indices = @transform_0, window_bounds = array<i64: 1, 8, 256>}, {pipeline_mode = #tpu.pipeline_mode<synchronous>, transform_indices = @transform_1, window_bounds = array<i64: 8, 72>}, {pipeline_mode = #tpu.pipeline_mode<synchronous>, transform_indices = @transform_2, window_bounds = array<i64: 8, 1>}, {pipeline_mode = #tpu.pipeline_mode<synchronous>, transform_indices = @transform_3, window_bounds = array<i64: 9, 256>}, {transform_indices = @transform_4, window_bounds = array<i64: 1, 8, 256>}]} {
    %c0 = arith.constant 0 : index
    %c0_0 = arith.constant 0 : index
    %c0_1 = arith.constant 0 : index
    %0 = vector.load %arg1[%c0, %c0_0, %c0_1] : memref<1x8x256xf32, #tpu.memory_space<vmem>>, vector<1x8x256xf32>
    %1 = vector.shape_cast %0 : vector<1x8x256xf32> to vector<8x256xf32>
    %c0_2 = arith.constant 0 : index
    %c0_3 = arith.constant 0 : index
    %2 = vector.load %arg4[%c0_2, %c0_3] : memref<9x256xf32, #tpu.memory_space<vmem>>, vector<9x256xf32>
    %c17_i32 = arith.constant 17 : i32
    %3 = tpu.dynamic_rotate %1 by %c17_i32 dim 1 : vector<8x256xf32>, i32 -> vector<8x256xf32>
    %4 = vector.extract_strided_slice %2 {offsets = [0, 0], sizes = [1, 256], strides = [1, 1]} : vector<9x256xf32> to vector<1x256xf32>
    %5 = vector.broadcast %4 : vector<1x256xf32> to vector<8x256xf32>
    %6 = arith.mulf %3, %5 : vector<8x256xf32>
    %c0_4 = arith.constant 0 : index
    %c0_5 = arith.constant 0 : index
    %7 = vector.load %arg6[%c0_4, %c0_5] : memref<72x256xf32, #tpu.memory_space<vmem>>, vector<8x256xf32>
    tpu.vector_store %arg6[%c0_4, %c0_5], %6 {strides = array<i32>} : memref<72x256xf32, #tpu.memory_space<vmem>>, vector<8x256xf32>,
    %c16_i32 = arith.constant 16 : i32
    %8 = tpu.dynamic_rotate %1 by %c16_i32 dim 1 : vector<8x256xf32>, i32 -> vector<8x256xf32>
    %9 = vector.extract_strided_slice %2 {offsets = [1, 0], sizes = [1, 256], strides = [1, 1]} : vector<9x256xf32> to vector<1x256xf32>
    %10 = vector.broadcast %9 : vector<1x256xf32> to vector<8x256xf32>
    %11 = arith.mulf %8, %10 : vector<8x256xf32>
    %c8 = arith.constant 8 : index
    %c0_6 = arith.constant 0 : index
    %12 = vector.load %arg6[%c8, %c0_6] : memref<72x256xf32, #tpu.memory_space<vmem>>, vector<8x256xf32>
    tpu.vector_store %arg6[%c8, %c0_6], %11 {strides = array<i32>} : memref<72x256xf32, #tpu.memory_space<vmem>>, vector<8x256xf32>,
    %c15_i32 = arith.constant 15 : i32
    %13 = tpu.dynamic_rotate %1 by %c15_i32 dim 1 : vector<8x256xf32>, i32 -> vector<8x256xf32>
    %14 = vector.extract_strided_slice %2 {offsets = [2, 0], sizes = [1, 256], strides = [1, 1]} : vector<9x256xf32> to vector<1x256xf32>
    %15 = vector.broadcast %14 : vector<1x256xf32> to vector<8x256xf32>
    %16 = arith.mulf %13, %15 : vector<8x256xf32>
    %c16 = arith.constant 16 : index
    %c0_7 = arith.constant 0 : index
    %17 = vector.load %arg6[%c16, %c0_7] : memref<72x256xf32, #tpu.memory_space<vmem>>, vector<8x256xf32>
    tpu.vector_store %arg6[%c16, %c0_7], %16 {strides = array<i32>} : memref<72x256xf32, #tpu.memory_space<vmem>>, vector<8x256xf32>,
    %c1_i32 = arith.constant 1 : i32
    %18 = tpu.dynamic_rotate %1 by %c1_i32 dim 1 : vector<8x256xf32>, i32 -> vector<8x256xf32>
    %19 = vector.extract_strided_slice %2 {offsets = [3, 0], sizes = [1, 256], strides = [1, 1]} : vector<9x256xf32> to vector<1x256xf32>
    %20 = vector.broadcast %19 : vector<1x256xf32> to vector<8x256xf32>
    %21 = arith.mulf %18, %20 : vector<8x256xf32>
    %c24 = arith.constant 24 : index
    %c0_8 = arith.constant 0 : index
    %22 = vector.load %arg6[%c24, %c0_8] : memref<72x256xf32, #tpu.memory_space<vmem>>, vector<8x256xf32>
    tpu.vector_store %arg6[%c24, %c0_8], %21 {strides = array<i32>} : memref<72x256xf32, #tpu.memory_space<vmem>>, vector<8x256xf32>,
    %c32 = arith.constant 32 : index
    %c0_9 = arith.constant 0 : index
    %23 = vector.load %arg6[%c32, %c0_9] : memref<72x256xf32, #tpu.memory_space<vmem>>, vector<8x256xf32>
    tpu.vector_store %arg6[%c32, %c0_9], %1 {strides = array<i32>} : memref<72x256xf32, #tpu.memory_space<vmem>>, vector<8x256xf32>,
    %c255_i32 = arith.constant 255 : i32
    %24 = tpu.dynamic_rotate %1 by %c255_i32 dim 1 : vector<8x256xf32>, i32 -> vector<8x256xf32>
    %25 = vector.extract_strided_slice %2 {offsets = [5, 0], sizes = [1, 256], strides = [1, 1]} : vector<9x256xf32> to vector<1x256xf32>
    %26 = vector.broadcast %25 : vector<1x256xf32> to vector<8x256xf32>
    %27 = arith.mulf %24, %26 : vector<8x256xf32>
    %c40 = arith.constant 40 : index
    %c0_10 = arith.constant 0 : index
    %28 = vector.load %arg6[%c40, %c0_10] : memref<72x256xf32, #tpu.memory_space<vmem>>, vector<8x256xf32>
    tpu.vector_store %arg6[%c40, %c0_10], %27 {strides = array<i32>} : memref<72x256xf32, #tpu.memory_space<vmem>>, vector<8x256xf32>,
    %c241_i32 = arith.constant 241 : i32
    %29 = tpu.dynamic_rotate %1 by %c241_i32 dim 1 : vector<8x256xf32>, i32 -> vector<8x256xf32>
    %30 = vector.extract_strided_slice %2 {offsets = [6, 0], sizes = [1, 256], strides = [1, 1]} : vector<9x256xf32> to vector<1x256xf32>
    %31 = vector.broadcast %30 : vector<1x256xf32> to vector<8x256xf32>
    %32 = arith.mulf %29, %31 : vector<8x256xf32>
    %c48 = arith.constant 48 : index
    %c0_11 = arith.constant 0 : index
    %33 = vector.load %arg6[%c48, %c0_11] : memref<72x256xf32, #tpu.memory_space<vmem>>, vector<8x256xf32>
    tpu.vector_store %arg6[%c48, %c0_11], %32 {strides = array<i32>} : memref<72x256xf32, #tpu.memory_space<vmem>>, vector<8x256xf32>,
    %c240_i32 = arith.constant 240 : i32
    %34 = tpu.dynamic_rotate %1 by %c240_i32 dim 1 : vector<8x256xf32>, i32 -> vector<8x256xf32>
    %35 = vector.extract_strided_slice %2 {offsets = [7, 0], sizes = [1, 256], strides = [1, 1]} : vector<9x256xf32> to vector<1x256xf32>
    %36 = vector.broadcast %35 : vector<1x256xf32> to vector<8x256xf32>
    %37 = arith.mulf %34, %36 : vector<8x256xf32>
    %c56 = arith.constant 56 : index
    %c0_12 = arith.constant 0 : index
    %38 = vector.load %arg6[%c56, %c0_12] : memref<72x256xf32, #tpu.memory_space<vmem>>, vector<8x256xf32>
    tpu.vector_store %arg6[%c56, %c0_12], %37 {strides = array<i32>} : memref<72x256xf32, #tpu.memory_space<vmem>>, vector<8x256xf32>,
    %c239_i32 = arith.constant 239 : i32
    %39 = tpu.dynamic_rotate %1 by %c239_i32 dim 1 : vector<8x256xf32>, i32 -> vector<8x256xf32>
    %40 = vector.extract_strided_slice %2 {offsets = [8, 0], sizes = [1, 256], strides = [1, 1]} : vector<9x256xf32> to vector<1x256xf32>
    %41 = vector.broadcast %40 : vector<1x256xf32> to vector<8x256xf32>
    %42 = arith.mulf %39, %41 : vector<8x256xf32>
    %c64 = arith.constant 64 : index
    %c0_13 = arith.constant 0 : index
    %43 = vector.load %arg6[%c64, %c0_13] : memref<72x256xf32, #tpu.memory_space<vmem>>, vector<8x256xf32>
    tpu.vector_store %arg6[%c64, %c0_13], %42 {strides = array<i32>} : memref<72x256xf32, #tpu.memory_space<vmem>>, vector<8x256xf32>,
    %c0_14 = arith.constant 0 : index
    %c0_15 = arith.constant 0 : index
    %44 = vector.load %arg2[%c0_14, %c0_15] : memref<8x72xf32, #tpu.memory_space<vmem>>, vector<8x72xf32>
    %c0_16 = arith.constant 0 : index
    %c0_17 = arith.constant 0 : index
    %45 = vector.load %arg6[%c0_16, %c0_17] : memref<72x256xf32, #tpu.memory_space<vmem>>, vector<72x256xf32>
    %cst = arith.constant dense<0.000000e+00> : vector<8x256xf32>
    %46 = tpu.matmul %44, %45, %cst {dimension_numbers = #tpu.dot_dimension_numbers<[1], [0], [0], [1], [0, 0, 1, 1], [], []>} : vector<8x72xf32>, vector<72x256xf32>, vector<8x256xf32> -> vector<8x256xf32>
    %c0_18 = arith.constant 0 : index
    %c0_19 = arith.constant 0 : index
    %47 = vector.load %arg3[%c0_18, %c0_19] : memref<8x1xf32, #tpu.memory_space<vmem>>, vector<8x1xf32>
    %48 = vector.broadcast %47 : vector<8x1xf32> to vector<8x256xf32>
    %49 = arith.addf %46, %48 : vector<8x256xf32>
    %c0_20 = arith.constant 0 : index
    %c0_21 = arith.constant 0 : index
    %c0_22 = arith.constant 0 : index
    %50 = vector.load %arg5[%c0_20, %c0_21, %c0_22] : memref<1x8x256xf32, #tpu.memory_space<vmem>>, vector<1x8x256xf32>
    %51 = vector.shape_cast %50 : vector<1x8x256xf32> to vector<8x256xf32>
    %52 = vector.shape_cast %49 : vector<8x256xf32> to vector<1x8x256xf32>
    tpu.vector_store %arg5[%c0_20, %c0_21, %c0_22], %52 {strides = array<i32>} : memref<1x8x256xf32, #tpu.memory_space<vmem>>, vector<1x8x256xf32>,
    return
  }
  func.func @transform_0(%arg0: i32) -> (i32, i32, i32) {
    %c0_i32 = arith.constant 0 : i32
    %c0_i32_0 = arith.constant 0 : i32
    %c0_i32_1 = arith.constant 0 : i32
    return %arg0, %c0_i32, %c0_i32_0 : i32, i32, i32
  }
  func.func @transform_1(%arg0: i32) -> (i32, i32) {
    %c0_i32 = arith.constant 0 : i32
    %c0_i32_0 = arith.constant 0 : i32
    %c0_i32_1 = arith.constant 0 : i32
    return %c0_i32, %c0_i32_0 : i32, i32
  }
  func.func @transform_2(%arg0: i32) -> (i32, i32) {
    %c0_i32 = arith.constant 0 : i32
    %c0_i32_0 = arith.constant 0 : i32
    %c0_i32_1 = arith.constant 0 : i32
    return %c0_i32, %c0_i32_0 : i32, i32
  }
  func.func @transform_3(%arg0: i32) -> (i32, i32) {
    %c0_i32 = arith.constant 0 : i32
    %c0_i32_0 = arith.constant 0 : i32
    %c0_i32_1 = arith.constant 0 : i32
    return %c0_i32, %c0_i32_0 : i32, i32
  }
  func.func @transform_4(%arg0: i32) -> (i32, i32, i32) {
    %c0_i32 = arith.constant 0 : i32
    %c0_i32_0 = arith.constant 0 : i32
    %c0_i32_1 = arith.constant 0 : i32
    return %arg0, %c0_i32, %c0_i32_0 : i32, i32, i32
  }
}

</mosaic_0001>

<llo_original>
// kernel: tpu_custom_call.1
$region0: #{tpu_custom_call.1}
  #allocation0 [shape = 'u32[]', space=smem, size = 0x4, offset = 0x4, fixed_abs, tag = 'smem constant byte address 0x4 - core index']
  #allocation1 [shape = 'u32[72,128]{1,0:T(1,128)}', space=vmem, size = 0x9000, scoped, tag = 'internal scratch']
  #allocation2 [shape = 'f32[72,256]{1,0:T(8,128)}', space=vmem, size = 0x12000, scoped, tag = 'scratch operand']
  %s0 = inlined_call_operand.hbm [shape: f32[2,8,256], index: 0, kind: input, shape index: {}]
  %s1 = inlined_call_operand.vmem [shape: f32[8,72], index: 1, kind: input, shape index: {}]
  %s2 = inlined_call_operand.vmem [shape: f32[8,1], index: 2, kind: input, shape index: {}]
  %s3 = inlined_call_operand.hbm [shape: f32[9,256], index: 3, kind: input, shape index: {}]
  %s4 = inlined_call_operand.hbm [shape: f32[2,8,256], index: 4, kind: output, shape index: {}]
  %s5 = sld [smem:[#allocation0]]
  $region57: #{tpu_custom_call.1} parent=0
    _
  %s7 = ssub.s32 1, %s5
  %s8 = scalar_select 0, %s7, %s5
  $region1: #{tpu_custom_call.1} parent=0
    #allocation3 [shape = 'u8[16384]{0}', space=vmem, size = 0x4000, scoped, tag = 'input window, operand 0']
    #allocation4 [shape = 's32[2]{0}', space=sflag, size = 0x8, scoped, tag = 'scoped memory for tpu_custom_call.1']
    #allocation5 [shape = 's32[2]{0}', space=sflag, size = 0x8, scoped, tag = 'scoped memory for tpu_custom_call.1']
    #allocation6 [shape = 'u8[16384]{0}', space=vmem, size = 0x4000, scoped, tag = 'input window, operand 3, single buffered']
    #allocation7 [shape = 's32[1]{0}', space=sflag, size = 0x4, scoped, tag = 'scoped memory for tpu_custom_call.1']
    #allocation8 [shape = 'u8[16384]{0}', space=vmem, size = 0x4000, scoped, tag = 'output window, operand 0']
    %9 = vsyncpa [#allocation4], 0
    %s10 = scalar_lea.sflag [#allocation4], 1
    %11 = vsyncpa %s10, 0
    %12 = vsyncpa [#allocation7], 0
    %13 = vsyncpa [#allocation5], 0
    %s14 = scalar_lea.sflag [#allocation5], 1
    %15 = vsyncpa %s14, 0
    loop: start=0, step=1, limit=4
    $region2: #{tpu_custom_call.1} parent=1 // loop_pre_header
      _
    $region3: #{tpu_custom_call.1} parent=1 // loop_header
      %s17 = sphi 0, %s21
      %p18 = scmp.ge.s32.totalorder %s17, 4
      %s27 = sphi 0, %s29
      %s30 = sphi 0, %s27
      %s31 = sphi 0, %s30
      %s47 = sphi 0, %s31
      %s51 = sphi 0, %s51
      %s53 = sphi 0, %s51
      %s54 = sphi 0, %s53
      %s68 = sphi 0, %s54
      %s72 = sphi 0, %s72
      %s74 = sphi 0, %s72
      %s75 = sphi 0, %s74
      %s89 = sphi 0, %s75
      %s93 = sphi 0, %s93
      %s95 = sphi 0, %s93
      %s96 = sphi 0, %s95
      %s110 = sphi 0, %s96
      %s116 = sphi 0, %s118
      %s119 = sphi 0, %s116
      %s120 = sphi 0, %s119
      %s136 = sphi 0, %s120
    $region4: #{tpu_custom_call.1} parent=1 // loop_header_branch
      %20 = sbr.rel (%p18) target = $region8
    $region5: #{tpu_custom_call.1} parent=1 // loop_body
      %s22 = ssub.s32 %s17, 1
      %s23 = ssub.s32 %s17, 2
      %s24 = sadd.s32 %s17, 1
      %s25 = ssub.s32 %s17, %s24
      %p26 = scmp.eq.s32.totalorder %s25, 0
      %s28 = sadd.s32 %s27, 1
      %s29 = scalar_select %p26, %s27, %s28
      %p32 = pneg %p26
      %p33 = scmp.eq.s32.totalorder %s17, 1
      %p34 = por %p32, %p33
      %p35 = scmp.ne.s32.totalorder %s27, %s30
      %p36 = scmp.eq.s32.totalorder %s17, 0
      %p37 = por %p35, %p36
      %p38 = scmp.ne.s32.totalorder %s27, %s30
      %p39 = scmp.eq.s32.totalorder %s22, 1
      %p40 = por %p38, %p39
      %p41 = scmp.ne.s32.totalorder %s30, %s31
      %p42 = scmp.eq.s32.totalorder %s22, 0
      %p43 = por %p41, %p42
      %p44 = scmp.ne.s32.totalorder %s30, %s31
      %p45 = scmp.eq.s32.totalorder %s23, 1
      %p46 = por %p44, %p45
      %p48 = scmp.ne.s32.totalorder %s31, %s47
      %p49 = scmp.eq.s32.totalorder %s23, 0
      %p50 = por %p48, %p49
      %s52 = sadd.s32 %s51, 1
      %p55 = scmp.eq.s32.totalorder %s17, 1
      %p56 = scmp.ne.s32.totalorder %s51, %s53
      %p57 = scmp.eq.s32.totalorder %s17, 0
      %p58 = por %p56, %p57
      %p59 = scmp.ne.s32.totalorder %s51, %s53
      %p60 = scmp.eq.s32.totalorder %s22, 1
      %p61 = por %p59, %p60
      %p62 = scmp.ne.s32.totalorder %s53, %s54
      %p63 = scmp.eq.s32.totalorder %s22, 0
      %p64 = por %p62, %p63
      %p65 = scmp.ne.s32.totalorder %s53, %s54
      %p66 = scmp.eq.s32.totalorder %s23, 1
      %p67 = por %p65, %p66
      %p69 = scmp.ne.s32.totalorder %s54, %s68
      %p70 = scmp.eq.s32.totalorder %s23, 0
      %p71 = por %p69, %p70
      %s73 = sadd.s32 %s72, 1
      %p76 = scmp.eq.s32.totalorder %s17, 1
      %p77 = scmp.ne.s32.totalorder %s72, %s74
      %p78 = scmp.eq.s32.totalorder %s17, 0
      %p79 = por %p77, %p78
      %p80 = scmp.ne.s32.totalorder %s72, %s74
      %p81 = scmp.eq.s32.totalorder %s22, 1
      %p82 = por %p80, %p81
      %p83 = scmp.ne.s32.totalorder %s74, %s75
      %p84 = scmp.eq.s32.totalorder %s22, 0
      %p85 = por %p83, %p84
      %p86 = scmp.ne.s32.totalorder %s74, %s75
      %p87 = scmp.eq.s32.totalorder %s23, 1
      %p88 = por %p86, %p87
      %p90 = scmp.ne.s32.totalorder %s75, %s89
      %p91 = scmp.eq.s32.totalorder %s23, 0
      %p92 = por %p90, %p91
      %s94 = sadd.s32 %s93, 1
      %p97 = scmp.eq.s32.totalorder %s17, 1
      %p98 = scmp.ne.s32.totalorder %s93, %s95
      %p99 = scmp.eq.s32.totalorder %s17, 0
      %p100 = por %p98, %p99
      %p101 = scmp.ne.s32.totalorder %s93, %s95
      %p102 = scmp.eq.s32.totalorder %s22, 1
      %p103 = por %p101, %p102
      %p104 = scmp.ne.s32.totalorder %s95, %s96
      %p105 = scmp.eq.s32.totalorder %s22, 0
      %p106 = por %p104, %p105
      %p107 = scmp.ne.s32.totalorder %s95, %s96
      %p108 = scmp.eq.s32.totalorder %s23, 1
      %p109 = por %p107, %p108
      %p111 = scmp.ne.s32.totalorder %s96, %s110
      %p112 = scmp.eq.s32.totalorder %s23, 0
      %p113 = por %p111, %p112
      %s114 = ssub.s32 %s17, %s24
      %p115 = scmp.eq.s32.totalorder %s114, 0
      %s117 = sadd.s32 %s116, 1
      %s118 = scalar_select %p115, %s116, %s117
      %p121 = pneg %p115
      %p122 = scmp.eq.s32.totalorder %s17, 1
      %p123 = por %p121, %p122
      %p124 = scmp.ne.s32.totalorder %s116, %s119
      %p125 = scmp.eq.s32.totalorder %s17, 0
      %p126 = por %p124, %p125
      %p127 = scmp.ne.s32.totalorder %s116, %s119
      %p128 = scmp.eq.s32.totalorder %s22, 1
      %p129 = por %p127, %p128
      %p130 = scmp.ne.s32.totalorder %s119, %s120
      %p131 = scmp.eq.s32.totalorder %s22, 0
      %p132 = por %p130, %p131
      %p133 = scmp.ne.s32.totalorder %s119, %s120
      %p134 = scmp.eq.s32.totalorder %s23, 1
      %p135 = por %p133, %p134
      %p137 = scmp.ne.s32.totalorder %s120, %s136
      %p138 = scmp.eq.s32.totalorder %s23, 0
      %p139 = por %p137, %p138
      %p140 = scmp.le.s32.totalorder 1, %s17
      %p141 = scmp.lt.s32.totalorder %s17, 3
      %p142 = pnand %p140, %p141
      %p143 = pneg %p142
      // Predicated region
      $region9: #{tpu_custom_call.1} parent=5 // pred_check
        _
      $region10: #{tpu_custom_call.1} parent=5 // pred_check_branch
        %145 = sbr.rel (%p142) target = $region12
      $region11: #{tpu_custom_call.1} parent=5 // pred_region
        %s146 = ssub.s32 %s17, 1
        // Predicated region
        $region13: #{tpu_custom_call.1} parent=11 // pred_check
          %p147 = pneg %p64
        $region14: #{tpu_custom_call.1} parent=11 // pred_check_branch
          %149 = sbr.rel (%p147) target = $region16
        $region15: #{tpu_custom_call.1} parent=11 // pred_region
          _
        $region16: #{tpu_custom_call.1} parent=11 // pred_fallthru
          _
        // Predicated region
        $region17: #{tpu_custom_call.1} parent=11 // pred_check
          %p150 = pneg %p85
        $region18: #{tpu_custom_call.1} parent=11 // pred_check_branch
          %152 = sbr.rel (%p150) target = $region20
        $region19: #{tpu_custom_call.1} parent=11 // pred_region
          _
        $region20: #{tpu_custom_call.1} parent=11 // pred_fallthru
          _
        // Predicated region
        $region21: #{tpu_custom_call.1} parent=11 // pred_check
          %p153 = pneg %p106
        $region22: #{tpu_custom_call.1} parent=11 // pred_check_branch
          %155 = sbr.rel (%p153) target = $region24
        $region23: #{tpu_custom_call.1} parent=11 // pred_region
          %157 = vsyncadd [#allocation7], 0
          %s158 = sshll.u32 %s3, 4
          %s159 = int_to_ptr.hbm [resolvable:$true] %s158
          %s160 = sshll.u32 [#allocation6], 4
          %s161 = int_to_ptr.vmem [resolvable:$true] %s160
          %166 = dma.hbm_to_vmem [thread:$0]  %s159, 512, %s161, [#allocation7], 256, 256, 16
        $region24: #{tpu_custom_call.1} parent=11 // pred_fallthru
          _
      $region12: #{tpu_custom_call.1} parent=5 // pred_fallthru
        _
      %p167 = scmp.lt.s32.totalorder %s17, 2
      // Predicated region
      $region25: #{tpu_custom_call.1} parent=5 // pred_check
        %p168 = pneg %p167
      $region26: #{tpu_custom_call.1} parent=5 // pred_check_branch
        %170 = sbr.rel (%p168) target = $region28
      $region27: #{tpu_custom_call.1} parent=5 // pred_region
        // Predicated region
        $region29: #{tpu_custom_call.1} parent=27 // pred_check
          %p171 = pneg %p37
        $region30: #{tpu_custom_call.1} parent=27 // pred_check_branch
          %173 = sbr.rel (%p171) target = $region32
        $region31: #{tpu_custom_call.1} parent=27 // pred_region
          %s174 = sand.u32 %s27, 1
          %s175 = scalar_lea.sflag [#allocation4], %s174
          %s176 = sand.u32 %s27, 1
          %s177 = smul.addr %s176, 16
          %s178 = scalar_lea.vmem [#allocation3], %s177
          %180 = vsyncadd %s175, 0
          %s181 = smul.addr %s17, 2
          %s182 = smul.addr %s181, 8
          %s183 = scalar_lea.hbm %s0, %s182
          %s185 = sshll.u32 %s183, 4
          %s186 = int_to_ptr.hbm [resolvable:$true] %s185
          %s187 = sshll.u32 %s178, 4
          %s188 = int_to_ptr.vmem [resolvable:$true] %s187
          %190 = dma.hbm_to_vmem [thread:$0]  %s186, 256, %s188, %s175
        $region32: #{tpu_custom_call.1} parent=27 // pred_fallthru
          _
      $region28: #{tpu_custom_call.1} parent=5 // pred_fallthru
        _
      %p191 = scmp.le.s32.totalorder 1, %s17
      %p192 = scmp.lt.s32.totalorder %s17, 3
      %p193 = pnand %p191, %p192
      %p194 = pneg %p193
      // Predicated region
      $region33: #{tpu_custom_call.1} parent=5 // pred_check
        _
      $region34: #{tpu_custom_call.1} parent=5 // pred_check_branch
        %196 = sbr.rel (%p193) target = $region36
      $region35: #{tpu_custom_call.1} parent=5 // pred_region
        %s197 = ssub.s32 %s17, 1
        %s198 = sand.u32 %s30, 1
        %s199 = scalar_lea.sflag [#allocation4], %s198
        %s200 = sand.u32 %s30, 1
        %s201 = smul.addr %s200, 16
        %s202 = scalar_lea.vmem [#allocation3], %s201
        // Predicated region
        $region37: #{tpu_custom_call.1} parent=35 // pred_check
          %p203 = pneg %p43
        $region38: #{tpu_custom_call.1} parent=35 // pred_check_branch
          %205 = sbr.rel (%p203) target = $region40
        $region39: #{tpu_custom_call.1} parent=35 // pred_region
          %207 = dma.done %s199, 256
        $region40: #{tpu_custom_call.1} parent=35 // pred_fallthru
          _
        // Predicated region
        $region41: #{tpu_custom_call.1} parent=35 // pred_check
          %p208 = pneg %p106
        $region42: #{tpu_custom_call.1} parent=35 // pred_check_branch
          %210 = sbr.rel (%p208) target = $region44
        $region43: #{tpu_custom_call.1} parent=35 // pred_region
          %212 = dma.done [#allocation7], 512
        $region44: #{tpu_custom_call.1} parent=35 // pred_fallthru
          _
        %s213 = sand.u32 %s30, 1
        %s214 = scalar_lea.sflag [#allocation4], %s213
        %s215 = sand.u32 %s30, 1
        %s216 = smul.addr %s215, 16
        %s217 = scalar_lea.vmem [#allocation3], %s216
        %p218 = pneg %p43
        %p219 = pneg %p40
        %p220 = pneg %p64
        %p221 = pneg %p61
        %p222 = pneg %p85
        %p223 = pneg %p82
        %p224 = pneg %p106
        %p225 = pneg %p103
        %p226 = pneg %p132
        %p227 = pneg %p129
        %s228 = sand.u32 %s119, 1
        %s229 = scalar_lea.sflag [#allocation5], %s228
        %s230 = sand.u32 %s119, 1
        %s231 = smul.addr %s230, 16
        %s232 = scalar_lea.vmem [#allocation8], %s231
        %v233 = vld [vmem:[%s202] sm:$0xff]
        %v234 = vld [vmem:[%s202 + $0x8] sm:$0xff]
        %v235 = vld [vmem:[#allocation6] sm:$0xff]
        %v236 = vld [vmem:[#allocation6 + $0x8] sm:$0xff]
        %v237 = vld [vmem:[#allocation6 + $0x10] sm:$0x1]
        %v238 = vld [vmem:[#allocation6 + $0x18] sm:$0x1]
        %239 = vrot.lane.b32.xlu0 %v233, 17
        %v240 = vpop.permute.xlu0 %239
        %241 = vrot.lane.b32.xlu0 %v234, 17
        %v242 = vpop.permute.xlu0 %241
        %v243 = vlaneseq
        %v244 = vand.u32 %v243, 127
        %vm245 = vcmp.lt.s32.totalorder %v244, 17
        %v246 = vsel %vm245, %v240, %v242
        %v247 = vsel %vm245, %v242, %v240
        %v248 = vperm.slane %v235, 0
        %v249 = vperm.slane %v236, 0
        %v250 = vmul.f32 %v247, %v248
        %v251 = vmul.f32 %v246, %v249
        %252 = vst [vmem:[#allocation2] sm:$0xff] %v250
        %253 = vst [vmem:[#allocation2 + $0x8] sm:$0xff] %v251
        %254 = vrot.lane.b32.xlu0 %v233, 16
        %v255 = vpop.permute.xlu0 %254
        %256 = vrot.lane.b32.xlu0 %v234, 16
        %v257 = vpop.permute.xlu0 %256
        %vm258 = vcmp.lt.s32.totalorder %v244, 16
        %v259 = vsel %vm258, %v255, %v257
        %v260 = vsel %vm258, %v257, %v255
        %v261 = vperm.slane %v235, 1
        %v262 = vperm.slane %v236, 1
        %v263 = vmul.f32 %v260, %v261
        %v264 = vmul.f32 %v259, %v262
        %265 = vst [vmem:[#allocation2 + $0x10] sm:$0xff] %v263
        %266 = vst [vmem:[#allocation2 + $0x18] sm:$0xff] %v264
        %267 = vrot.lane.b32.xlu0 %v233, 15
        %v268 = vpop.permute.xlu0 %267
        %269 = vrot.lane.b32.xlu0 %v234, 15
        %v270 = vpop.permute.xlu0 %269
        %vm271 = vcmp.lt.s32.totalorder %v244, 15
        %v272 = vsel %vm271, %v268, %v270
        %v273 = vsel %vm271, %v270, %v268
        %v274 = vperm.slane %v235, 2
        %v275 = vperm.slane %v236, 2
        %v276 = vmul.f32 %v273, %v274
        %v277 = vmul.f32 %v272, %v275
        %278 = vst [vmem:[#allocation2 + $0x20] sm:$0xff] %v276
        %279 = vst [vmem:[#allocation2 + $0x28] sm:$0xff] %v277
        %280 = vrot.lane.b32.xlu0 %v233, 1
        %v281 = vpop.permute.xlu0 %280
        %282 = vrot.lane.b32.xlu0 %v234, 1
        %v283 = vpop.permute.xlu0 %282
        %vm284 = vcmp.lt.s32.totalorder %v244, 1
        %v285 = vsel %vm284, %v281, %v283
        %v286 = vsel %vm284, %v283, %v281
        %v287 = vperm.slane %v235, 3
        %v288 = vperm.slane %v236, 3
        %v289 = vmul.f32 %v286, %v287
        %v290 = vmul.f32 %v285, %v288
        %291 = vst [vmem:[#allocation2 + $0x30] sm:$0xff] %v289
        %292 = vst [vmem:[#allocation2 + $0x38] sm:$0xff] %v290
        %293 = vst [vmem:[#allocation2 + $0x40] sm:$0xff] %v233
        %294 = vst [vmem:[#allocation2 + $0x48] sm:$0xff] %v234
        %295 = vrot.lane.b32.xlu0 %v233, 127
        %v296 = vpop.permute.xlu0 %295
        %297 = vrot.lane.b32.xlu0 %v234, 127
        %v298 = vpop.permute.xlu0 %297
        %vm299 = vcmp.lt.s32.totalorder %v244, 127
        %v300 = vsel %vm299, %v296, %v298
        %v301 = vsel %vm299, %v298, %v296
        %v302 = vperm.slane %v235, 5
        %v303 = vperm.slane %v236, 5
        %v304 = vmul.f32 %v300, %v302
        %v305 = vmul.f32 %v301, %v303
        %306 = vst [vmem:[#allocation2 + $0x50] sm:$0xff] %v304
        %307 = vst [vmem:[#allocation2 + $0x58] sm:$0xff] %v305
        %308 = vrot.lane.b32.xlu0 %v233, 113
        %v309 = vpop.permute.xlu0 %308
        %310 = vrot.lane.b32.xlu0 %v234, 113
        %v311 = vpop.permute.xlu0 %310
        %vm312 = vcmp.lt.s32.totalorder %v244, 113
        %v313 = vsel %vm312, %v309, %v311
        %v314 = vsel %vm312, %v311, %v309
        %v315 = vperm.slane %v235, 6
        %v316 = vperm.slane %v236, 6
        %v317 = vmul.f32 %v313, %v315
        %v318 = vmul.f32 %v314, %v316
        %319 = vst [vmem:[#allocation2 + $0x60] sm:$0xff] %v317
        %320 = vst [vmem:[#allocation2 + $0x68] sm:$0xff] %v318
        %321 = vrot.lane.b32.xlu0 %v233, 112
        %v322 = vpop.permute.xlu0 %321
        %323 = vrot.lane.b32.xlu0 %v234, 112
        %v324 = vpop.permute.xlu0 %323
        %vm325 = vcmp.lt.s32.totalorder %v244, 112
        %v326 = vsel %vm325, %v322, %v324
        %v327 = vsel %vm325, %v324, %v322
        %v328 = vperm.slane %v235, 7
        %v329 = vperm.slane %v236, 7
        %v330 = vmul.f32 %v326, %v328
        %v331 = vmul.f32 %v327, %v329
        %332 = vst [vmem:[#allocation2 + $0x70] sm:$0xff] %v330
        %333 = vst [vmem:[#allocation2 + $0x78] sm:$0xff] %v331
        %334 = vrot.lane.b32.xlu0 %v233, 111
        %v335 = vpop.permute.xlu0 %334
        %336 = vrot.lane.b32.xlu0 %v234, 111
        %v337 = vpop.permute.xlu0 %336
        %vm338 = vcmp.lt.s32.totalorder %v244, 111
        %v339 = vsel %vm338, %v335, %v337
        %v340 = vsel %vm338, %v337, %v335
        %v341 = vperm.slane %v237, 0
        %v342 = vperm.slane %v238, 0
        %v343 = vmul.f32 %v339, %v341
        %v344 = vmul.f32 %v340, %v342
        %345 = vst [vmem:[#allocation2 + $0x80] sm:$0xff] %v343
        %346 = vst [vmem:[#allocation2 + $0x88] sm:$0xff] %v344
        %v347 = vld [vmem:[%s1] sm:$0xff]
        %v348 = vld [vmem:[#allocation2] sm:$0xff]
        %v349 = vld [vmem:[#allocation2 + $0x8] sm:$0xff]
        %v350 = vld [vmem:[#allocation2 + $0x10] sm:$0xff]
        %v351 = vld [vmem:[#allocation2 + $0x18] sm:$0xff]
        %v352 = vld [vmem:[#allocation2 + $0x20] sm:$0xff]
        %v353 = vld [vmem:[#allocation2 + $0x28] sm:$0xff]
        %v354 = vld [vmem:[#allocation2 + $0x30] sm:$0xff]
        %v355 = vld [vmem:[#allocation2 + $0x38] sm:$0xff]
        %v356 = vld [vmem:[#allocation2 + $0x40] sm:$0xff]
        %v357 = vld [vmem:[#allocation2 + $0x48] sm:$0xff]
        %v358 = vld [vmem:[#allocation2 + $0x50] sm:$0xff]
        %v359 = vld [vmem:[#allocation2 + $0x58] sm:$0xff]
        %v360 = vld [vmem:[#allocation2 + $0x60] sm:$0xff]
        %v361 = vld [vmem:[#allocation2 + $0x68] sm:$0xff]
        %v362 = vld [vmem:[#allocation2 + $0x70] sm:$0xff]
        %v363 = vld [vmem:[#allocation2 + $0x78] sm:$0xff]
        %v364 = vld [vmem:[#allocation2 + $0x80] sm:$0xff]
        %v365 = vld [vmem:[#allocation2 + $0x88] sm:$0xff]
        %v366 = vld [vmem:[%s2] sm:$0xff]
        %368 = vset.pattern.permute.xlu0 0
        %369 = vperm.xlu0 %368, %v366
        %v370 = vpop.permute.xlu0 %369
        %vm372 = vcmask 588800
        %v374 = vsel %vm372, %v347, 0
        %376 = vmatpush.msra.mxu0 0.0
        %377 = vmatpush.msra.mxu0 0.0
        %378 = vmatpush.msra.mxu0 0.0
        %379 = vmatpush.msra.mxu0 0.0
        %380 = vmatpush.msra.mxu0 0.0
        %381 = vmatpush.msra.mxu0 0.0
        %382 = vmatpush.msra.mxu0 0.0
        %383 = vmatpush.msra.mxu0 %v364
        %384 = vmatpush.msra.mxu0 %v362
        %385 = vmatpush.msra.mxu0 %v360
        %386 = vmatpush.msra.mxu0 %v358
        %387 = vmatpush.msra.mxu0 %v356
        %388 = vmatpush.msra.mxu0 %v354
        %389 = vmatpush.msra.mxu0 %v352
        %390 = vmatpush.msra.mxu0 %v350
        %391 = vmatpush.msra.mxu0 %v348
        %392 = vmatmul.f32.gmra.mxu0 %v374
        %v393 = vpop.f32.mrf.mxu0
        %v394 = vadd.f32 %v370, %v393
        %395 = vdwg.mxu0
        %396 = vmatpush.msra.mxu0 0.0
        %397 = vmatpush.msra.mxu0 0.0
        %398 = vmatpush.msra.mxu0 0.0
        %399 = vmatpush.msra.mxu0 0.0
        %400 = vmatpush.msra.mxu0 0.0
        %401 = vmatpush.msra.mxu0 0.0
        %402 = vmatpush.msra.mxu0 0.0
        %403 = vmatpush.msra.mxu0 %v365
        %404 = vmatpush.msra.mxu0 %v363
        %405 = vmatpush.msra.mxu0 %v361
        %406 = vmatpush.msra.mxu0 %v359
        %407 = vmatpush.msra.mxu0 %v357
        %408 = vmatpush.msra.mxu0 %v355
        %409 = vmatpush.msra.mxu0 %v353
        %410 = vmatpush.msra.mxu0 %v351
        %411 = vmatpush.msra.mxu0 %v349
        %412 = vmatmul.f32.gmra.mxu0 %v374
        %v413 = vpop.f32.mrf.mxu0
        %v414 = vadd.f32 %v370, %v413
        %415 = vdwg.mxu0
        %416 = vst [vmem:[%s232] sm:$0xff] %v394
        %417 = vst [vmem:[%s232 + $0x8] sm:$0xff] %v414
        %s418 = sand.u32 %s119, 1
        %s419 = scalar_lea.sflag [#allocation5], %s418
        %s420 = sand.u32 %s119, 1
        %s421 = smul.addr %s420, 16
        %s422 = scalar_lea.vmem [#allocation8], %s421
        // Predicated region
        $region45: #{tpu_custom_call.1} parent=35 // pred_check
          %p423 = pneg %p129
        $region46: #{tpu_custom_call.1} parent=35 // pred_check_branch
          %425 = sbr.rel (%p423) target = $region48
        $region47: #{tpu_custom_call.1} parent=35 // pred_region
          %427 = vsyncadd %s419, 0
          %s428 = smul.addr %s22, 2
          %s429 = smul.addr %s428, 8
          %s430 = scalar_lea.hbm %s4, %s429
          %s432 = sshll.u32 %s422, 4
          %s433 = int_to_ptr.vmem [resolvable:$true] %s432
          %s434 = sshll.u32 %s430, 4
          %s435 = int_to_ptr.hbm [resolvable:$true] %s434
          %437 = dma.vmem_to_hbm [thread:$0]  %s433, 256, %s435, %s419
        $region48: #{tpu_custom_call.1} parent=35 // pred_fallthru
          _
      $region36: #{tpu_custom_call.1} parent=5 // pred_fallthru
        _
      %p438 = scmp.le.s32.totalorder 2, %s17
      // Predicated region
      $region49: #{tpu_custom_call.1} parent=5 // pred_check
        %p439 = pneg %p438
      $region50: #{tpu_custom_call.1} parent=5 // pred_check_branch
        %441 = sbr.rel (%p439) target = $region52
      $region51: #{tpu_custom_call.1} parent=5 // pred_region
        %s442 = ssub.s32 %s17, 2
        // Predicated region
        $region53: #{tpu_custom_call.1} parent=51 // pred_check
          %p443 = pneg %p135
        $region54: #{tpu_custom_call.1} parent=51 // pred_check_branch
          %445 = sbr.rel (%p443) target = $region56
        $region55: #{tpu_custom_call.1} parent=51 // pred_region
          %s446 = sand.u32 %s120, 1
          %s447 = scalar_lea.sflag [#allocation5], %s446
          %s448 = sand.u32 %s120, 1
          %s449 = smul.addr %s448, 16
          %s450 = scalar_lea.vmem [#allocation8], %s449
          %452 = dma.done %s447, 256
        $region56: #{tpu_custom_call.1} parent=51 // pred_fallthru
          _
      $region52: #{tpu_custom_call.1} parent=5 // pred_fallthru
        _
    $region6: #{tpu_custom_call.1} parent=1 // loop_footer
      %s21 = sadd.s32 1, %s17
    $region7: #{tpu_custom_call.1} parent=1 // loop_footer_branch
      %16 = sbr.rel target = $region3
    $region8: #{tpu_custom_call.1} parent=1 // loop_exit
      _
    %453 = vsyncpa [#allocation4], 1
    %s454 = scalar_lea.sflag [#allocation4], 1
    %455 = vsyncpa %s454, 1
    %456 = vsyncpa [#allocation7], 1
    %457 = vsyncpa [#allocation5], 1
    %s458 = scalar_lea.sflag [#allocation5], 1
    %459 = vsyncpa %s458, 1

</llo_original>
